<compile_context>
chip_gen: v5e
topology: v5e:2x2
jax: 0.10.0
libtpu: 0.0.40
codegen_flags: <defaults>
</compile_context>

<pallas_src>
import functools

import jax
import jax.numpy as jnp
from jax.experimental import pallas as pl
from jax.experimental.pallas import tpu as pltpu


def _round_up(x, m):
    return ((x + m - 1) // m) * m


def _label_smoothing_kernel(pred_ref, tgt_ref, out_ref, acc_ref, *,
                            confidence, off_value, num_classes,
                            batch_size, tile_b):
    b = pl.program_id(0)

    @pl.when(b == 0)
    def _():
        acc_ref[0, 0] = jnp.float32(0.0)

    # Stream pred in its native dtype, upcast to f32 on the VPU.
    pred = pred_ref[...].astype(jnp.float32)          # (TILE_B, C)
    tb, C = pred.shape

    # Numerically-stable log-softmax pieces; keepdims keeps (TILE_B, 1) vregs.
    m = jnp.max(pred, axis=-1, keepdims=True)
    shifted = pred - m
    lse = jnp.log(jnp.sum(jnp.exp(shifted), axis=-1, keepdims=True))

    # Shifted logit at the target class via >=2D iota compare (no gather).
    col = jax.lax.broadcasted_iota(jnp.int32, (tb, C), 1)
    onehot = col == tgt_ref[...]                      # (TILE_B, C) bool
    sel_shift = jnp.sum(jnp.where(onehot, shifted, 0.0), axis=-1, keepdims=True)
    row_shift_sum = jnp.sum(shifted, axis=-1, keepdims=True)

    # Smoothed cross-entropy without materializing true_dist:
    #   sum_c -true_dist[c]*logp[c]
    #     = -(conf - off) * logp[target] - off * sum_c logp[c]
    logp_tgt = sel_shift - lse
    logp_sum = row_shift_sum - jnp.float32(num_classes) * lse
    per_row = (-(confidence - off_value) * logp_tgt
               - off_value * logp_sum)                # (TILE_B, 1)

    # Mask padded rows of the (possibly ragged) last batch tile.
    row = b * tile_b + jax.lax.broadcasted_iota(jnp.int32, (tb, 1), 0)
    per_row = jnp.where(row < batch_size, per_row, 0.0)

    acc_ref[0, 0] += jnp.sum(per_row)

    @pl.when(b == pl.num_programs(0) - 1)
    def _():
        out_ref[0, 0] = acc_ref[0, 0] / jnp.float32(batch_size)


def _choose_tile_b(B, C, itemsize, per_buffer_bytes):
    """Largest sublane-aligned batch tile whose pred slab fits the budget."""
    if B <= 8:
        return B  # block equal to the full batch dim is always legal
    rows = per_buffer_bytes // max(1, C * itemsize)
    rows = max(8, (rows // 8) * 8)
    return min(rows, (B // 8) * 8)


def label_smoothing_loss(pred, target, *, classes, smoothing=0.0,
                         tile_b=None, per_buffer_bytes=4 * 1024 * 1024):
    """pred: (B, C) float (any dtype), target: (B,) int -> scalar f32 loss."""
    B, C = pred.shape
    assert C == classes
    confidence = 1.0 - smoothing
    # Matches the PyTorch reference (divides by classes-1; classes==1 is UB there too).
    off_value = smoothing / (classes - 1) if classes > 1 else 0.0

    itemsize = jnp.dtype(pred.dtype).itemsize
    if tile_b is None:
        tile_b = _choose_tile_b(B, C, itemsize, per_buffer_bytes)
    grid = pl.cdiv(B, tile_b)

    # Double-buffered pred slab + small target slab; keep the scoped-VMEM
    # request modest so it is safe on v7x (64 MiB physical VMEM).
    vmem_limit = min(96 * 1024 * 1024,
                     max(32 * 1024 * 1024, 4 * tile_b * C * itemsize))

    kernel = functools.partial(
        _label_smoothing_kernel,
        confidence=confidence,
        off_value=off_value,
        num_classes=classes,
        batch_size=B,
        tile_b=tile_b,
    )

    # TODO(synk): for vocab sizes where a single (tile_b, C) row-slab is too
    # large, add a second grid axis over C with an online max/logsumexp pass.
    out = pl.pallas_call(
        kernel,
        out_shape=jax.ShapeDtypeStruct((1, 1), jnp.float32),
        grid_spec=pltpu.PrefetchScalarGridSpec(
            num_scalar_prefetch=0,
            grid=(grid,),
            in_specs=[
                pl.BlockSpec((tile_b, C), lambda b: (b, 0)),
                pl.BlockSpec((tile_b, 1), lambda b: (b, 0)),
            ],
            out_specs=pl.BlockSpec((1, 1), lambda b: (0, 0),
                                   memory_space=pltpu.SMEM),
            scratch_shapes=[pltpu.SMEM((1, 1), jnp.float32)],
        ),
        compiler_params=pltpu.CompilerParams(
            dimension_semantics=("arbitrary",),   # batch axis feeds one accumulator
            vmem_limit_bytes=vmem_limit,
        ),
    )(pred, target.astype(jnp.int32).reshape(B, 1))
    return out[0, 0]


def _reference(pred, target, *, classes, smoothing):
    confidence = 1.0 - smoothing
    logp = jax.nn.log_softmax(pred.astype(jnp.float32), axis=-1)
    true_dist = jnp.full_like(logp, smoothing / (classes - 1))
    true_dist = true_dist.at[jnp.arange(pred.shape[0]), target].set(confidence)
    return jnp.mean(jnp.sum(-true_dist * logp, axis=-1))


if __name__ == "__main__":
    # Small demo shape; B=12 with TILE_B=8 exercises the grid + ragged-tile mask.
    B, C = 12, 32
    smoothing = 0.1

    key = jax.random.PRNGKey(0)
    k1, k2 = jax.random.split(key)
    pred = jax.random.normal(k1, (B, C), dtype=jnp.float32)
    target = jax.random.randint(k2, (B,), 0, C, dtype=jnp.int32)

    loss = label_smoothing_loss(pred, target, classes=C, smoothing=smoothing)
    loss = jax.block_until_ready(loss)

    ref = _reference(pred, target, classes=C, smoothing=smoothing)
    assert jnp.allclose(loss, ref, atol=1e-5, rtol=1e-5), (loss, ref)

    print("KERNEL_OK")
</pallas_src>

<mosaic_0001>
module attributes {stable_mosaic.version = 11 : i64} {
  func.func @_label_smoothing_kernel(%arg0: i32, %arg1: memref<8x32xf32, #tpu.memory_space<vmem>>, %arg2: memref<8x1xi32, #tpu.memory_space<vmem>>, %arg3: memref<1x1xf32, #tpu.memory_space<smem>>, %arg4: memref<1x1xf32, #tpu.memory_space<smem>>) attributes {dimension_semantics = [#tpu.dimension_semantics<arbitrary>], iteration_bounds = array<i64: 2>, scalar_prefetch = 0 : i64, scratch_operands = 1 : i64, tpu.core_type = #tpu.core_type<tc>, window_params = [{transform_indices = @transform_0, window_bounds = array<i64: 8, 32>}, {transform_indices = @transform_1, window_bounds = array<i64: 8, 1>}, {transform_indices = @transform_2, window_bounds = array<i64: 1, 1>}]} {
    %c0_i32 = arith.constant 0 : i32
    %0 = arith.cmpi eq, %arg0, %c0_i32 : i32
    %1 = arith.extui %0 : i1 to i32
    %c0_i32_0 = arith.constant 0 : i32
    %2 = arith.cmpi ne, %1, %c0_i32_0 : i32
    scf.if %2 {
      %cst_18 = arith.constant 0.000000e+00 : f32
      %c0_19 = arith.constant 0 : index
      %c0_20 = arith.constant 0 : index
      %49 = memref.load %arg4[%c0_19, %c0_20] : memref<1x1xf32, #tpu.memory_space<smem>>
      memref.store %cst_18, %arg4[%c0_19, %c0_20] : memref<1x1xf32, #tpu.memory_space<smem>>
    } else {
    }
    %c0 = arith.constant 0 : index
    %c0_1 = arith.constant 0 : index
    %3 = vector.load %arg1[%c0, %c0_1] : memref<8x32xf32, #tpu.memory_space<vmem>>, vector<8x32xf32>
    %cst = arith.constant dense<0xFF800000> : vector<8xf32>
    %4 = vector.multi_reduction <maximumf>, %3, %cst [1] : vector<8x32xf32> to vector<8xf32>
    %5 = vector.shape_cast %4 : vector<8xf32> to vector<8x1xf32>
    %6 = vector.broadcast %5 : vector<8x1xf32> to vector<8x32xf32>
    %7 = arith.subf %3, %6 : vector<8x32xf32>
    %8 = math.exp %7 : vector<8x32xf32>
    %cst_2 = arith.constant dense<0.000000e+00> : vector<8xf32>
    %9 = vector.multi_reduction <add>, %8, %cst_2 [1] : vector<8x32xf32> to vector<8xf32>
    %10 = vector.shape_cast %9 : vector<8xf32> to vector<8x1xf32>
    %11 = math.log %10 : vector<8x1xf32>
    %12 = tpu.iota {dimensions = array<i32: 1>} : vector<8x32xi32>
    %c0_3 = arith.constant 0 : index
    %c0_4 = arith.constant 0 : index
    %13 = vector.load %arg2[%c0_3, %c0_4] : memref<8x1xi32, #tpu.memory_space<vmem>>, vector<8x1xi32>
    %14 = vector.broadcast %13 : vector<8x1xi32> to vector<8x32xi32>
    %15 = arith.cmpi eq, %12, %14 : vector<8x32xi32>
    %cst_5 = arith.constant 0.000000e+00 : f32
    %16 = vector.broadcast %cst_5 : f32 to vector<8x32xf32>
    %17 = arith.select %15, %7, %16 : vector<8x32xi1>, vector<8x32xf32>
    %cst_6 = arith.constant dense<0.000000e+00> : vector<8xf32>
    %18 = vector.multi_reduction <add>, %17, %cst_6 [1] : vector<8x32xf32> to vector<8xf32>
    %19 = vector.shape_cast %18 : vector<8xf32> to vector<8x1xf32>
    %cst_7 = arith.constant dense<0.000000e+00> : vector<8xf32>
    %20 = vector.multi_reduction <add>, %7, %cst_7 [1] : vector<8x32xf32> to vector<8xf32>
    %21 = vector.shape_cast %20 : vector<8xf32> to vector<8x1xf32>
    %22 = arith.subf %19, %11 : vector<8x1xf32>
    %cst_8 = arith.constant 3.200000e+01 : f32
    %23 = vector.broadcast %cst_8 : f32 to vector<8x1xf32>
    %24 = arith.mulf %23, %11 : vector<8x1xf32>
    %25 = arith.subf %21, %24 : vector<8x1xf32>
    %cst_9 = arith.constant -0.896774172 : f32
    %26 = vector.broadcast %cst_9 : f32 to vector<8x1xf32>
    %27 = arith.mulf %26, %22 : vector<8x1xf32>
    %cst_10 = arith.constant 0.0032258064 : f32
    %28 = vector.broadcast %cst_10 : f32 to vector<8x1xf32>
    %29 = arith.mulf %28, %25 : vector<8x1xf32>
    %30 = arith.subf %27, %29 : vector<8x1xf32>
    %c8_i32 = arith.constant 8 : i32
    %31 = arith.muli %arg0, %c8_i32 : i32
    %32 = tpu.iota {dimensions = array<i32: 0>} : vector<8x1xi32>
    %33 = vector.broadcast %31 : i32 to vector<8x1xi32>
    %34 = arith.addi %33, %32 : vector<8x1xi32>
    %c12_i32 = arith.constant 12 : i32
    %35 = vector.broadcast %c12_i32 : i32 to vector<8x1xi32>
    %36 = arith.cmpi slt, %34, %35 : vector<8x1xi32>
    %cst_11 = arith.constant 0.000000e+00 : f32
    %37 = vector.broadcast %cst_11 : f32 to vector<8x1xf32>
    %38 = arith.select %36, %30, %37 : vector<8x1xi1>, vector<8x1xf32>
    %c0_12 = arith.constant 0 : index
    %c0_13 = arith.constant 0 : index
    %39 = memref.load %arg4[%c0_12, %c0_13] : memref<1x1xf32, #tpu.memory_space<smem>>
    %40 = vector.shape_cast %38 : vector<8x1xf32> to vector<1x8x1xf32>
    %cst_14 = arith.constant dense<0.000000e+00> : vector<1xf32>
    %41 = vector.multi_reduction <add>, %40, %cst_14 [1, 2] : vector<1x8x1xf32> to vector<1xf32>
    %42 = vector.shape_cast %41 : vector<1xf32> to vector<1x1x1xf32>
    %43 = vector.extract %42[0, 0, 0] : f32 from vector<1x1x1xf32>
    %44 = arith.addf %39, %43 : f32
    %c0_15 = arith.constant 0 : index
    %c0_16 = arith.constant 0 : index
    %45 = memref.load %arg4[%c0_15, %c0_16] : memref<1x1xf32, #tpu.memory_space<smem>>
    memref.store %44, %arg4[%c0_15, %c0_16] : memref<1x1xf32, #tpu.memory_space<smem>>
    %c1_i32 = arith.constant 1 : i32
    %46 = arith.cmpi eq, %arg0, %c1_i32 : i32
    %47 = arith.extui %46 : i1 to i32
    %c0_i32_17 = arith.constant 0 : i32
    %48 = arith.cmpi ne, %47, %c0_i32_17 : i32
    scf.if %48 {
      %c0_18 = arith.constant 0 : index
      %c0_19 = arith.constant 0 : index
      %49 = memref.load %arg4[%c0_18, %c0_19] : memref<1x1xf32, #tpu.memory_space<smem>>
      %cst_20 = arith.constant 1.200000e+01 : f32
      %50 = arith.divf %49, %cst_20 : f32
      %c0_21 = arith.constant 0 : index
      %c0_22 = arith.constant 0 : index
      %51 = memref.load %arg3[%c0_21, %c0_22] : memref<1x1xf32, #tpu.memory_space<smem>>
      memref.store %50, %arg3[%c0_21, %c0_22] : memref<1x1xf32, #tpu.memory_space<smem>>
    } else {
    }
    return
  }
  func.func @transform_0(%arg0: i32) -> (i32, i32) {
    %c0_i32 = arith.constant 0 : i32
    %c0_i32_0 = arith.constant 0 : i32
    return %arg0, %c0_i32 : i32, i32
  }
  func.func @transform_1(%arg0: i32) -> (i32, i32) {
    %c0_i32 = arith.constant 0 : i32
    %c0_i32_0 = arith.constant 0 : i32
    return %arg0, %c0_i32 : i32, i32
  }
  func.func @transform_2(%arg0: i32) -> (i32, i32) {
    %c0_i32 = arith.constant 0 : i32
    %c0_i32_0 = arith.constant 0 : i32
    %c0_i32_1 = arith.constant 0 : i32
    return %c0_i32, %c0_i32_0 : i32, i32
  }
}

</mosaic_0001>

<llo_original>
// kernel: tpu_custom_call.1
$region0: #{tpu_custom_call.1}
  #allocation0 [shape = 'u32[]', space=smem, size = 0x4, offset = 0x4, fixed_abs, tag = 'smem constant byte address 0x4 - core index']
  #allocation1 [shape = 'u32[72,128]{1,0:T(1,128)}', space=vmem, size = 0x9000, scoped, tag = 'internal scratch']
  #allocation2 [shape = 'f32[1,1]{1,0:T(1,128)}', space=smem, size = 0x200, scoped, tag = 'scratch operand']
  %s0 = inlined_call_operand.vmem [shape: f32[12,32], index: 0, kind: input, shape index: {}]
  %s1 = inlined_call_operand.vmem [shape: s32[12,1], index: 1, kind: input, shape index: {}]
  %s2 = inlined_call_operand.hbm [shape: f32[1,1], index: 2, kind: output, shape index: {}]
  %s3 = sld [smem:[#allocation0]]
  $region49: #{tpu_custom_call.1} parent=0
    _
  %s5 = ssub.s32 1, %s3
  %s6 = scalar_select 0, %s5, %s3
  $region1: #{tpu_custom_call.1} parent=0
    #allocation3 [shape = 'u8[512]{0}', space=smem, size = 0x200, scoped, tag = 'output window, operand 0, single buffered']
    #allocation4 [shape = 's32[2]{0}', space=sflag, size = 0x8, scoped, tag = 'scoped memory for tpu_custom_call.1']
    %7 = vsyncpa [#allocation4], 0
    loop: start=0, step=1, limit=4
    $region2: #{tpu_custom_call.1} parent=1 // loop_pre_header
      _
    $region3: #{tpu_custom_call.1} parent=1 // loop_header
      %s9 = sphi 0, %s13
      %p10 = scmp.ge.s32.totalorder %s9, 4
      %s19 = sphi 0, %s21
      %s22 = sphi 0, %s19
      %s23 = sphi 0, %s22
      %s39 = sphi 0, %s23
      %s45 = sphi 0, %s47
      %s48 = sphi 0, %s45
      %s49 = sphi 0, %s48
      %s65 = sphi 0, %s49
      %s69 = sphi 0, %s69
      %s71 = sphi 0, %s69
      %s72 = sphi 0, %s71
      %s86 = sphi 0, %s72
    $region4: #{tpu_custom_call.1} parent=1 // loop_header_branch
      %12 = sbr.rel (%p10) target = $region8
    $region5: #{tpu_custom_call.1} parent=1 // loop_body
      %s14 = ssub.s32 %s9, 1
      %s15 = ssub.s32 %s9, 2
      %s16 = sadd.s32 %s9, 1
      %s17 = ssub.s32 %s9, %s16
      %p18 = scmp.eq.s32.totalorder %s17, 0
      %s20 = sadd.s32 %s19, 1
      %s21 = scalar_select %p18, %s19, %s20
      %p24 = pneg %p18
      %p25 = scmp.eq.s32.totalorder %s9, 1
      %p26 = por %p24, %p25
      %p27 = scmp.ne.s32.totalorder %s19, %s22
      %p28 = scmp.eq.s32.totalorder %s9, 0
      %p29 = por %p27, %p28
      %p30 = scmp.ne.s32.totalorder %s19, %s22
      %p31 = scmp.eq.s32.totalorder %s14, 1
      %p32 = por %p30, %p31
      %p33 = scmp.ne.s32.totalorder %s22, %s23
      %p34 = scmp.eq.s32.totalorder %s14, 0
      %p35 = por %p33, %p34
      %p36 = scmp.ne.s32.totalorder %s22, %s23
      %p37 = scmp.eq.s32.totalorder %s15, 1
      %p38 = por %p36, %p37
      %p40 = scmp.ne.s32.totalorder %s23, %s39
      %p41 = scmp.eq.s32.totalorder %s15, 0
      %p42 = por %p40, %p41
      %s43 = ssub.s32 %s9, %s16
      %p44 = scmp.eq.s32.totalorder %s43, 0
      %s46 = sadd.s32 %s45, 1
      %s47 = scalar_select %p44, %s45, %s46
      %p50 = pneg %p44
      %p51 = scmp.eq.s32.totalorder %s9, 1
      %p52 = por %p50, %p51
      %p53 = scmp.ne.s32.totalorder %s45, %s48
      %p54 = scmp.eq.s32.totalorder %s9, 0
      %p55 = por %p53, %p54
      %p56 = scmp.ne.s32.totalorder %s45, %s48
      %p57 = scmp.eq.s32.totalorder %s14, 1
      %p58 = por %p56, %p57
      %p59 = scmp.ne.s32.totalorder %s48, %s49
      %p60 = scmp.eq.s32.totalorder %s14, 0
      %p61 = por %p59, %p60
      %p62 = scmp.ne.s32.totalorder %s48, %s49
      %p63 = scmp.eq.s32.totalorder %s15, 1
      %p64 = por %p62, %p63
      %p66 = scmp.ne.s32.totalorder %s49, %s65
      %p67 = scmp.eq.s32.totalorder %s15, 0
      %p68 = por %p66, %p67
      %s70 = sadd.s32 %s69, 1
      %p73 = scmp.eq.s32.totalorder %s9, 1
      %p74 = scmp.ne.s32.totalorder %s69, %s71
      %p75 = scmp.eq.s32.totalorder %s9, 0
      %p76 = por %p74, %p75
      %p77 = scmp.ne.s32.totalorder %s69, %s71
      %p78 = scmp.eq.s32.totalorder %s14, 1
      %p79 = por %p77, %p78
      %p80 = scmp.ne.s32.totalorder %s71, %s72
      %p81 = scmp.eq.s32.totalorder %s14, 0
      %p82 = por %p80, %p81
      %p83 = scmp.ne.s32.totalorder %s71, %s72
      %p84 = scmp.eq.s32.totalorder %s15, 1
      %p85 = por %p83, %p84
      %p87 = scmp.ne.s32.totalorder %s72, %s86
      %p88 = scmp.eq.s32.totalorder %s15, 0
      %p89 = por %p87, %p88
      %p90 = scmp.le.s32.totalorder 1, %s9
      %p91 = scmp.lt.s32.totalorder %s9, 3
      %p92 = pnand %p90, %p91
      %p93 = pneg %p92
      // Predicated region
      $region9: #{tpu_custom_call.1} parent=5 // pred_check
        _
      $region10: #{tpu_custom_call.1} parent=5 // pred_check_branch
        %95 = sbr.rel (%p92) target = $region12
      $region11: #{tpu_custom_call.1} parent=5 // pred_region
        %s96 = ssub.s32 %s9, 1
      $region12: #{tpu_custom_call.1} parent=5 // pred_fallthru
        _
      %p97 = scmp.lt.s32.totalorder %s9, 2
      // Predicated region
      $region13: #{tpu_custom_call.1} parent=5 // pred_check
        %p98 = pneg %p97
      $region14: #{tpu_custom_call.1} parent=5 // pred_check_branch
        %100 = sbr.rel (%p98) target = $region16
      $region15: #{tpu_custom_call.1} parent=5 // pred_region
        // Predicated region
        $region17: #{tpu_custom_call.1} parent=15 // pred_check
          %p101 = pneg %p29
        $region18: #{tpu_custom_call.1} parent=15 // pred_check_branch
          %103 = sbr.rel (%p101) target = $region20
        $region19: #{tpu_custom_call.1} parent=15 // pred_region
          %p104 = scmp.lt.s32.totalorder %s9, 1
          %s105 = scalar_select %p104, %s9, 1
          %s106 = smul.addr %s105, 8
          %s107 = scalar_lea.vmem %s0, %s106
        $region20: #{tpu_custom_call.1} parent=15 // pred_fallthru
          _
        // Predicated region
        $region21: #{tpu_custom_call.1} parent=15 // pred_check
          %p108 = pneg %p55
        $region22: #{tpu_custom_call.1} parent=15 // pred_check_branch
          %110 = sbr.rel (%p108) target = $region24
        $region23: #{tpu_custom_call.1} parent=15 // pred_region
          %p111 = scmp.lt.s32.totalorder %s9, 1
          %s112 = scalar_select %p111, %s9, 1
          %s113 = smul.addr %s112, 8
          %s114 = scalar_lea.vmem %s1, %s113
        $region24: #{tpu_custom_call.1} parent=15 // pred_fallthru
          _
      $region16: #{tpu_custom_call.1} parent=5 // pred_fallthru
        _
      %p115 = scmp.le.s32.totalorder 1, %s9
      %p116 = scmp.lt.s32.totalorder %s9, 3
      %p117 = pnand %p115, %p116
      %p118 = pneg %p117
      // Predicated region
      $region25: #{tpu_custom_call.1} parent=5 // pred_check
        _
      $region26: #{tpu_custom_call.1} parent=5 // pred_check_branch
        %120 = sbr.rel (%p117) target = $region28
      $region27: #{tpu_custom_call.1} parent=5 // pred_region
        %s121 = ssub.s32 %s9, 1
        %p122 = scmp.lt.s32.totalorder %s14, 1
        %s123 = scalar_select %p122, %s14, 1
        %s124 = smul.addr %s123, 8
        %s125 = scalar_lea.vmem %s0, %s124
        %p126 = pneg %p35
        %p127 = pneg %p32
        %p128 = scmp.lt.s32.totalorder %s14, 1
        %s129 = scalar_select %p128, %s14, 1
        %s130 = smul.addr %s129, 8
        %s131 = scalar_lea.vmem %s1, %s130
        %p132 = pneg %p61
        %p133 = pneg %p58
        %p134 = pneg %p82
        %p135 = pneg %p79
        %p136 = scmp.lt.s32.totalorder %s14, 1
        %s137 = scalar_select %p136, %s14, 1
        %s138 = smul.addr %s137, 8
        %s139 = scalar_lea.vmem %s0, %s138
        %p140 = scmp.lt.s32.totalorder %s14, 1
        %s141 = scalar_select %p140, %s14, 1
        %s142 = smul.addr %s141, 8
        %s143 = scalar_lea.vmem %s1, %s142
        %p144 = scmp.eq.s32.totalorder %s14, 0
        // Predicated region
        $region29: #{tpu_custom_call.1} parent=27 // pred_check
          %p145 = pneg %p144
        $region30: #{tpu_custom_call.1} parent=27 // pred_check_branch
          %147 = sbr.rel (%p145) target = $region32
        $region31: #{tpu_custom_call.1} parent=27 // pred_region
          %s148 = scalar_lea.smem [#allocation2], 0
          %149 = sst [smem:[%s148]] 0.0
        $region32: #{tpu_custom_call.1} parent=27 // pred_fallthru
          _
        %v150 = vld [vmem:[%s139] sm:$0xff]
        %vm151 = vcmask 261120
        %v152 = vsel %vm151, %v150, -inf
        %153 = vmax.xlane.f32.xlu0 %v152
        %v154 = vpop.xlane.xlu0 %153
        %v155 = vsub.f32 %v150, %v154
        %v156 = vmul.f32 %v155, 1.442695
        %v157 = vpow.pop %v156
        %v158 = vsel %vm151, %v157, 0.0
        %159 = vadd.xlane.f32.xlu0 %v158
        %v160 = vpop.xlane.xlu0 %159
        %v161 = vlog2.pop %v160
        %v162 = vmul.f32 %v161, 0.6931472
        %v163 = vlaneseq
        %v164 = vand.u32 %v163, 127
        %v165 = vld [vmem:[%s143] sm:$0xff]
        %166 = vset.pattern.permute.xlu0 0
        %167 = vperm.xlu0 %166, %v165
        %v168 = vpop.permute.xlu0 %167
        %vm169 = vcmp.eq.s32.totalorder %v164, %v168
        %v170 = vsel %vm169, %v155, 0.0
        %v171 = vsel %vm151, %v170, 0.0
        %172 = vadd.xlane.f32.xlu0 %v171
        %v173 = vpop.xlane.xlu0 %172
        %v174 = vsel %vm151, %v155, 0.0
        %175 = vadd.xlane.f32.xlu0 %v174
        %v176 = vpop.xlane.xlu0 %175
        %v177 = vsub.f32 %v173, %v162
        %v178 = vmul.f32 %v162, 32.0
        %v179 = vsub.f32 %v176, %v178
        %v180 = vmul.f32 %v177, -0.8967742
        %v181 = vmul.f32 %v179, 0.0032258064
        %v182 = vsub.f32 %v180, %v181
        %s183 = smul.u32 %s14, 8
        %v184 = vlaneseq
        %v185 = vshrl.u32 %v184, 7
        %v186 = vstv %s183
        %v187 = vadd.s32 %v186, %v185
        %vm188 = vcmp.lt.s32.totalorder %v187, 12
        %v189 = vsel %vm188, %v182, 0.0
        %s190 = sld [smem:[#allocation2]]
        %vm191 = vcmask 7168
        %v192 = vsel %vm191, %v189, 0.0
        %193 = vadd.xlane.f32.xlu0 %v192
        %v194 = vpop.xlane.xlu0 %193
        %v195 = vrot.slane %v194, 4
        %v196 = vadd.f32 %v194, %v195
        %v197 = vrot.slane %v196, 2
        %v198 = vadd.f32 %v196, %v197
        %v199 = vrot.slane %v198, 1
        %v200 = vadd.f32 %v198, %v199
        %s201 = vtos %v200
        %s202 = sadd.f32 %s190, %s201
        %s203 = scalar_lea.smem [#allocation2], 0
        %204 = sst [smem:[%s203]] %s202
        %p205 = scmp.eq.s32.totalorder %s14, 1
        // Predicated region
        $region33: #{tpu_custom_call.1} parent=27 // pred_check
          %p206 = pneg %p205
        $region34: #{tpu_custom_call.1} parent=27 // pred_check_branch
          %208 = sbr.rel (%p206) target = $region36
        $region35: #{tpu_custom_call.1} parent=27 // pred_region
          %s209 = sld [smem:[#allocation2]]
          %v210 = vrcp.pop 12.0
          %v211 = vmul.f32 12.0, %v210
          %v212 = vsub.f32 1.0, %v211
          %v213 = vmul.f32 %v210, %v212
          %v214 = vadd.f32 %v210, %v213
          %vm215 = vweird.f32 %v210
          %v216 = vsel %vm215, %v210, %v214
          %s217 = vtos %v216
          %s218 = smul.f32 %s209, %s217
          %s219 = scalar_lea.smem [#allocation3], 0
          %220 = sst [smem:[%s219]] %s218
        $region36: #{tpu_custom_call.1} parent=27 // pred_fallthru
          _
        // Predicated region
        $region37: #{tpu_custom_call.1} parent=27 // pred_check
          %p221 = pneg %p79
        $region38: #{tpu_custom_call.1} parent=27 // pred_check_branch
          %223 = sbr.rel (%p221) target = $region40
        $region39: #{tpu_custom_call.1} parent=27 // pred_region
          %225 = vsyncadd [#allocation4], 0
          %s227 = sshll.u32 %s2, 4
          %s228 = int_to_ptr.hbm [resolvable:$true] %s227
          %230 = dma.smem_to_hbm [#allocation3], 16, %s228, [#allocation4]
        $region40: #{tpu_custom_call.1} parent=27 // pred_fallthru
          _
        // Predicated region
        $region41: #{tpu_custom_call.1} parent=27 // pred_check
          %p231 = pneg %p79
        $region42: #{tpu_custom_call.1} parent=27 // pred_check_branch
          %233 = sbr.rel (%p231) target = $region44
        $region43: #{tpu_custom_call.1} parent=27 // pred_region
          %235 = dma.done [#allocation4], 16
        $region44: #{tpu_custom_call.1} parent=27 // pred_fallthru
          _
        %236 = sfence
      $region28: #{tpu_custom_call.1} parent=5 // pred_fallthru
        _
      %p237 = scmp.le.s32.totalorder 2, %s9
      // Predicated region
      $region45: #{tpu_custom_call.1} parent=5 // pred_check
        %p238 = pneg %p237
      $region46: #{tpu_custom_call.1} parent=5 // pred_check_branch
        %240 = sbr.rel (%p238) target = $region48
      $region47: #{tpu_custom_call.1} parent=5 // pred_region
        %s241 = ssub.s32 %s9, 2
      $region48: #{tpu_custom_call.1} parent=5 // pred_fallthru
        _
    $region6: #{tpu_custom_call.1} parent=1 // loop_footer
      %s13 = sadd.s32 1, %s9
    $region7: #{tpu_custom_call.1} parent=1 // loop_footer_branch
      %8 = sbr.rel target = $region3
    $region8: #{tpu_custom_call.1} parent=1 // loop_exit
      _
    %242 = vsyncpa [#allocation4], 1
    %s243 = scalar_lea.sflag [#allocation4], 1
    %244 = vsyncpa %s243, 1

</llo_original>
